<compile_context>
chip_gen: v7x
topology: tpu7x:2x2x1
jax: 0.10.0
libtpu: 0.0.40
codegen_flags: <defaults>
</compile_context>

<pallas_src>
import functools

import jax
import jax.numpy as jnp
from jax.experimental import pallas as pl
from jax.experimental.pallas import tpu as pltpu

ATTR_EMB_DIM = 5  # self.attremb_dim in the PyTorch module


def _round_up(x, m):
    return ((x + m - 1) // m) * m


def _input_module_kernel(idx_ref, num_ref, rhs_ref, out_ref, *, sum_vocab, n_cate):
    """idx_ref: (TB, n_cate) int32 indices already shifted into combined-vocab
    lane ranges; num_ref: (TB, D_num) f32; rhs_ref: fused block-diagonal RHS
    (sum_vocab + D_num + 1, out_dim) f32; out_ref: (TB, out_dim) f32."""
    tb = idx_ref.shape[0]
    idx = idx_ref[...]                                             # (TB, n_cate)

    # One hoisted iota over the combined vocab lanes; per-feature lane ranges
    # are disjoint, so plain summation builds the combined one-hot.
    lane_ids = jax.lax.broadcasted_iota(jnp.int32, (tb, sum_vocab), 1)
    one_hot = jnp.zeros((tb, sum_vocab), jnp.float32)
    for i in range(n_cate):
        one_hot = one_hot + (lane_ids == idx[:, i:i + 1]).astype(jnp.float32)

    # LHS = [one_hot | x_num | 1]; constant-1 column picks up the bias row.
    lhs = jnp.concatenate(
        [one_hot, num_ref[...], jnp.ones((tb, 1), jnp.float32)], axis=1)

    # Single MXU matmul + single lane-dense store of the whole output row.
    out_ref[...] = jnp.dot(lhs, rhs_ref[...], preferred_element_type=jnp.float32)


def input_module_forward(cate_indices, tables, num_concat, w, b, *, tb=256):
    """cate_indices: list of (batch, 1) int32; tables: list of (vocab, 5) f32;
    num_concat: (batch, D_num) f32; w: (D_num, D_num) f32 (fc_num.weight, out,in);
    b: (D_num,) f32 (fc_num.bias)."""
    n_cate = len(cate_indices)
    assert n_cate > 0, "demo configuration expects at least one categorical feature"
    batch, dim_num = num_concat.shape
    vocab_sizes = [int(t.shape[0]) for t in tables]
    sum_vocab = sum(vocab_sizes)
    out_dim = n_cate * ATTR_EMB_DIM + dim_num
    total_rows = sum_vocab + dim_num + 1

    # ---- glue (plain JAX, outside the kernel) -------------------------------
    # Pack per-feature indices into (batch, n_cate) and shift each feature's
    # indices into its lane range of the combined one-hot.
    offs, acc = [], 0
    for v in vocab_sizes:
        offs.append(acc)
        acc += v
    offsets = jnp.asarray(offs, dtype=jnp.int32)
    idx_packed = (jnp.concatenate(cate_indices, axis=1).astype(jnp.int32)
                  + offsets[None, :])

    # Fused block-diagonal RHS: embedding tables on the diagonal, W^T in the
    # numerical block, bias as the final (constant-1-multiplied) row.
    rhs = jnp.zeros((total_rows, out_dim), jnp.float32)
    r, c = 0, 0
    for t, v in zip(tables, vocab_sizes):
        rhs = rhs.at[r:r + v, c:c + ATTR_EMB_DIM].set(t.astype(jnp.float32))
        r += v
        c += ATTR_EMB_DIM
    rhs = rhs.at[r:r + dim_num, c:c + dim_num].set(w.T.astype(jnp.float32))
    rhs = rhs.at[total_rows - 1, c:c + dim_num].set(b.astype(jnp.float32))

    # Batch tiling: tile rows must be a multiple of 8 sublanes; pad then slice.
    tb = min(tb, _round_up(batch, 8))
    padded_batch = _round_up(batch, tb)
    if padded_batch != batch:
        pad = padded_batch - batch
        idx_packed = jnp.pad(idx_packed, ((0, pad), (0, 0)))
        num_concat = jnp.pad(num_concat, ((0, pad), (0, 0)))

    kernel = functools.partial(
        _input_module_kernel, sum_vocab=sum_vocab, n_cate=n_cate)

    out = pl.pallas_call(
        kernel,
        out_shape=jax.ShapeDtypeStruct((padded_batch, out_dim), jnp.float32),
        grid_spec=pltpu.PrefetchScalarGridSpec(
            num_scalar_prefetch=0,
            grid=(padded_batch // tb,),
            in_specs=[
                pl.BlockSpec((tb, n_cate), lambda bi: (bi, 0)),        # indices
                pl.BlockSpec((tb, dim_num), lambda bi: (bi, 0)),       # numerical
                pl.BlockSpec((total_rows, out_dim), lambda bi: (0, 0)),  # resident RHS
            ],
            out_specs=pl.BlockSpec((tb, out_dim), lambda bi: (bi, 0)),
        ),
        compiler_params=pltpu.CompilerParams(
            dimension_semantics=("parallel",)),
    )(idx_packed, num_concat.astype(jnp.float32), rhs)

    return out[:batch]


def _reference(cate_indices, tables, num_concat, w, b):
    embs = [tables[i][cate_indices[i][:, 0]] for i in range(len(tables))]
    num_out = num_concat @ w.T + b[None, :]
    return jnp.concatenate(embs + [num_out], axis=1)


if __name__ == "__main__":
    key = jax.random.PRNGKey(0)
    batch = 8

    # Two categorical features (vocab sizes 7 and 11), three numerical features.
    vocab_sizes = (7, 11)
    num_numfeat = 3

    keys = jax.random.split(key, 2 + 2 * len(vocab_sizes) + num_numfeat)
    kiter = iter(keys)

    # Deterministic synthetic "parameters".
    tables = [
        jax.random.normal(next(kiter), (v, ATTR_EMB_DIM), dtype=jnp.float32)
        for v in vocab_sizes
    ]
    w = jax.random.normal(next(kiter), (num_numfeat, num_numfeat),
                          dtype=jnp.float32) * 0.1            # fc_num.weight (out, in)
    b = jax.random.normal(next(kiter), (num_numfeat,), dtype=jnp.float32) * 0.1

    # Inputs: per-feature categorical indices, per-feature numerical columns.
    cate_indices = [
        jax.random.randint(next(kiter), (batch, 1), 0, v, dtype=jnp.int32)
        for v in vocab_sizes
    ]
    num_cols = [
        jax.random.normal(next(kiter), (batch, 1), dtype=jnp.float32)
        for _ in range(num_numfeat)
    ]
    num_concat = jnp.concatenate(num_cols, axis=1)            # glue concat (plain JAX)

    out = input_module_forward(cate_indices, tables, num_concat, w, b)
    out = jax.block_until_ready(out)

    ref = _reference(cate_indices, tables, num_concat, w, b)
    assert out.shape == (batch, len(vocab_sizes) * ATTR_EMB_DIM + num_numfeat)
    assert jnp.allclose(out, ref, atol=1e-5, rtol=1e-5)

    print("KERNEL_OK")
</pallas_src>

<mosaic_0001>
module attributes {stable_mosaic.version = 11 : i64} {
  func.func @_input_module_kernel(%arg0: i32, %arg1: memref<8x2xi32, #tpu.memory_space<vmem>>, %arg2: memref<8x3xf32, #tpu.memory_space<vmem>>, %arg3: memref<22x13xf32, #tpu.memory_space<vmem>>, %arg4: memref<8x13xf32, #tpu.memory_space<vmem>>) attributes {dimension_semantics = [#tpu.dimension_semantics<parallel>], iteration_bounds = array<i64: 1>, scalar_prefetch = 0 : i64, scratch_operands = 0 : i64, tpu.core_type = #tpu.core_type<tc>, window_params = [{transform_indices = @transform_0, window_bounds = array<i64: 8, 2>}, {transform_indices = @transform_1, window_bounds = array<i64: 8, 3>}, {pipeline_mode = #tpu.pipeline_mode<synchronous>, transform_indices = @transform_2, window_bounds = array<i64: 22, 13>}, {transform_indices = @transform_3, window_bounds = array<i64: 8, 13>}]} {
    %c0 = arith.constant 0 : index
    %c0_0 = arith.constant 0 : index
    %0 = vector.load %arg1[%c0, %c0_0] : memref<8x2xi32, #tpu.memory_space<vmem>>, vector<8x2xi32>
    %1 = tpu.iota {dimensions = array<i32: 1>} : vector<8x18xi32>
    %cst = arith.constant 0.000000e+00 : f32
    %2 = vector.broadcast %cst : f32 to vector<8x18xf32>
    %3 = vector.extract_strided_slice %0 {offsets = [0, 0], sizes = [8, 1], strides = [1, 1]} : vector<8x2xi32> to vector<8x1xi32>
    %4 = vector.broadcast %3 : vector<8x1xi32> to vector<8x18xi32>
    %5 = arith.cmpi eq, %1, %4 : vector<8x18xi32>
    %6 = arith.extui %5 : vector<8x18xi1> to vector<8x18xi32>
    %7 = arith.sitofp %6 : vector<8x18xi32> to vector<8x18xf32>
    %8 = arith.addf %2, %7 : vector<8x18xf32>
    %9 = vector.extract_strided_slice %0 {offsets = [0, 1], sizes = [8, 1], strides = [1, 1]} : vector<8x2xi32> to vector<8x1xi32>
    %10 = vector.broadcast %9 : vector<8x1xi32> to vector<8x18xi32>
    %11 = arith.cmpi eq, %1, %10 : vector<8x18xi32>
    %12 = arith.extui %11 : vector<8x18xi1> to vector<8x18xi32>
    %13 = arith.sitofp %12 : vector<8x18xi32> to vector<8x18xf32>
    %14 = arith.addf %8, %13 : vector<8x18xf32>
    %c0_1 = arith.constant 0 : index
    %c0_2 = arith.constant 0 : index
    %15 = vector.load %arg2[%c0_1, %c0_2] : memref<8x3xf32, #tpu.memory_space<vmem>>, vector<8x3xf32>
    %cst_3 = arith.constant 1.000000e+00 : f32
    %16 = vector.broadcast %cst_3 : f32 to vector<8x1xf32>
    %17 = tpu.concatenate %14, %15, %16 in 1 : vector<8x18xf32>, vector<8x3xf32>, vector<8x1xf32> -> vector<8x22xf32>
    %c0_4 = arith.constant 0 : index
    %c0_5 = arith.constant 0 : index
    %18 = vector.load %arg3[%c0_4, %c0_5] : memref<22x13xf32, #tpu.memory_space<vmem>>, vector<22x13xf32>
    %cst_6 = arith.constant dense<0.000000e+00> : vector<8x13xf32>
    %19 = tpu.matmul %17, %18, %cst_6 {dimension_numbers = #tpu.dot_dimension_numbers<[1], [0], [0], [1], [0, 0, 1, 1], [], []>} : vector<8x22xf32>, vector<22x13xf32>, vector<8x13xf32> -> vector<8x13xf32>
    %c0_7 = arith.constant 0 : index
    %c0_8 = arith.constant 0 : index
    %20 = vector.load %arg4[%c0_7, %c0_8] : memref<8x13xf32, #tpu.memory_space<vmem>>, vector<8x13xf32>
    tpu.vector_store %arg4[%c0_7, %c0_8], %19 {strides = array<i32>} : memref<8x13xf32, #tpu.memory_space<vmem>>, vector<8x13xf32>,
    return
  }
  func.func @transform_0(%arg0: i32) -> (i32, i32) {
    %c0_i32 = arith.constant 0 : i32
    %c0_i32_0 = arith.constant 0 : i32
    return %arg0, %c0_i32 : i32, i32
  }
  func.func @transform_1(%arg0: i32) -> (i32, i32) {
    %c0_i32 = arith.constant 0 : i32
    %c0_i32_0 = arith.constant 0 : i32
    return %arg0, %c0_i32 : i32, i32
  }
  func.func @transform_2(%arg0: i32) -> (i32, i32) {
    %c0_i32 = arith.constant 0 : i32
    %c0_i32_0 = arith.constant 0 : i32
    %c0_i32_1 = arith.constant 0 : i32
    return %c0_i32, %c0_i32_0 : i32, i32
  }
  func.func @transform_3(%arg0: i32) -> (i32, i32) {
    %c0_i32 = arith.constant 0 : i32
    %c0_i32_0 = arith.constant 0 : i32
    return %arg0, %c0_i32 : i32, i32
  }
}

</mosaic_0001>

<llo_original>
// kernel: tpu_custom_call.1
$region0: #{tpu_custom_call.1}
  #allocation0 [shape = 'u32[]', space=smem, size = 0x4, offset = 0x4, fixed_abs, tag = 'smem constant byte address 0x4 - core index']
  #allocation1 [shape = 'u32[144,128]{1,0:T(1,128)}', space=vmem, size = 0x12000, scoped, tag = 'internal scratch']
  %s0 = inlined_call_operand.vmem [shape: s32[8,2], index: 0, kind: input, shape index: {}]
  %s1 = inlined_call_operand.vmem [shape: f32[8,3], index: 1, kind: input, shape index: {}]
  %s2 = inlined_call_operand.vmem [shape: f32[22,13], index: 2, kind: input, shape index: {}]
  %s3 = inlined_call_operand.hbm [shape: f32[8,13], index: 3, kind: output, shape index: {}]
  %s4 = sld [smem:[#allocation0]]
  $region22: #{tpu_custom_call.1} parent=0
    _
  %s6 = ssub.s32 1, %s4
  %s7 = scalar_select 0, %s6, %s4
  $region1: #{tpu_custom_call.1} parent=0
    #allocation2 [shape = 'u8[4096]{0}', space=vmem, size = 0x1000, scoped, tag = 'output window, operand 0, single buffered']
    #allocation3 [shape = 's32[1]{0}', space=sflag, size = 0x4, scoped, tag = 'scoped memory for tpu_custom_call.1']
    %8 = vsyncpa [#allocation3], 0
    // Predicated region
    $region2: #{tpu_custom_call.1} parent=1 // pred_check
      _
    $region3: #{tpu_custom_call.1} parent=1 // pred_check_branch
      %10 = sbr.rel (0) target = $region5
    $region4: #{tpu_custom_call.1} parent=1 // pred_region
      _
    $region5: #{tpu_custom_call.1} parent=1 // pred_fallthru
      _
    // Predicated region
    $region6: #{tpu_custom_call.1} parent=1 // pred_check
      _
    $region7: #{tpu_custom_call.1} parent=1 // pred_check_branch
      %12 = sbr.rel (0) target = $region9
    $region8: #{tpu_custom_call.1} parent=1 // pred_region
      _
    $region9: #{tpu_custom_call.1} parent=1 // pred_fallthru
      _
    // Predicated region
    $region10: #{tpu_custom_call.1} parent=1 // pred_check
      _
    $region11: #{tpu_custom_call.1} parent=1 // pred_check_branch
      %14 = sbr.rel (0) target = $region13
    $region12: #{tpu_custom_call.1} parent=1 // pred_region
      _
    $region13: #{tpu_custom_call.1} parent=1 // pred_fallthru
      _
    %v15 = vld [vmem:[%s0] sm:$0xff]
    %v16 = vlaneseq
    %v17 = vand.u32 %v16, 127
    %18 = vset.pattern.permute.xlu0 0
    %19 = vperm.xlu0 %18, %v15
    %v20 = vpop.permute.xlu0 %19
    %vm21 = vcmp.eq.s32.totalorder %v17, %v20
    %v22 = vsel %vm21, 1, 0
    %v23 = vcvt.s32.f32 %v22
    %v24 = vadd.f32 %v23, 0.0
    %25 = vset.pattern.permute.xlu0 1
    %26 = vperm.xlu0 %25, %v15
    %v27 = vpop.permute.xlu0 %26
    %vm28 = vcmp.eq.s32.totalorder %v17, %v27
    %v29 = vsel %vm28, 1, 0
    %v30 = vcvt.s32.f32 %v29
    %v31 = vadd.f32 %v24, %v30
    %v32 = vld [vmem:[%s1] sm:$0xff]
    %34 = vrot.lane.b32.xlu0 %v32, 18
    %v35 = vpop.permute.xlu0 %34
    %vm37 = vcmask 146432
    %v38 = vsel %vm37, %v31, %v35
    %vm39 = vcmask 171008
    %v40 = vsel %vm39, %v38, 1.0
    %v41 = vld [vmem:[%s2] sm:$0xff]
    %v42 = vld [vmem:[%s2 + $0x8] sm:$0xff]
    %v43 = vld [vmem:[%s2 + $0x10] sm:$0x3f]
    %vm44 = vcmask 179200
    %v46 = vsel %vm44, %v40, 0
    %vm48 = vcmask 1045504
    %v50 = vsel %vm48, %v43, 0
    %52 = vmatprep.subr.mxu0 0.0
    %53 = vmatpush1.msra.mxu0 %v41
    %54 = vmatprep.subr.mxu0 0.0
    %55 = vmatpush1.msra.mxu0 %v42
    %56 = vmatprep.subr.mxu0 0.0
    %57 = vmatpush1.msra.mxu0 %v50
    %58 = vmatprep.subr.mxu0 0.0
    %59 = vmatpush1.msra.mxu0 0.0
    %60 = vmatprep.subr.mxu0 0.0
    %61 = vmatpush1.msra.mxu0 0.0
    %62 = vmatprep.subr.mxu0 0.0
    %63 = vmatpush1.msra.mxu0 0.0
    %64 = vmatprep.subr.mxu0 0.0
    %65 = vmatpush1.msra.mxu0 0.0
    %66 = vmatprep.subr.mxu0 0.0
    %67 = vmatpush1.msra.mxu0 0.0
    %68 = vmatprep.subr.mxu0 0.0
    %69 = vmatpush1.msra.mxu0 0.0
    %70 = vmatprep.subr.mxu0 0.0
    %71 = vmatpush1.msra.mxu0 0.0
    %72 = vmatprep.subr.mxu0 0.0
    %73 = vmatpush1.msra.mxu0 0.0
    %74 = vmatprep.subr.mxu0 0.0
    %75 = vmatpush1.msra.mxu0 0.0
    %76 = vmatprep.subr.mxu0 0.0
    %77 = vmatpush1.msra.mxu0 0.0
    %78 = vmatprep.subr.mxu0 0.0
    %79 = vmatpush1.msra.mxu0 0.0
    %80 = vmatprep.subr.mxu0 0.0
    %81 = vmatpush1.msra.mxu0 0.0
    %82 = vmatprep.subr.mxu0 0.0
    %83 = vmatpush1.msra.mxu0 0.0
    %84 = vmatprep.subr.mxu0 0.0
    %85 = vmatpush1.msra.mxu0 0.0
    %86 = vmatprep.subr.mxu0 0.0
    %87 = vmatpush1.msra.mxu0 0.0
    %88 = vmatprep.subr.mxu0 0.0
    %89 = vmatpush1.msra.mxu0 0.0
    %90 = vmatprep.subr.mxu0 0.0
    %91 = vmatpush1.msra.mxu0 0.0
    %92 = vmatprep.subr.mxu0 0.0
    %93 = vmatpush1.msra.mxu0 0.0
    %94 = vmatprep.subr.mxu0 0.0
    %95 = vmatpush1.msra.mxu0 0.0
    %96 = vmatprep.subr.mxu0 0.0
    %97 = vmatpush1.msra.mxu0 0.0
    %98 = vmatprep.subr.mxu0 0.0
    %99 = vmatpush1.msra.mxu0 0.0
    %100 = vmatprep.subr.mxu0 0.0
    %101 = vmatpush1.msra.mxu0 0.0
    %102 = vmatprep.subr.mxu0 0.0
    %103 = vmatpush1.msra.mxu0 0.0
    %104 = vmatprep.subr.mxu0 0.0
    %105 = vmatpush1.msra.mxu0 0.0
    %106 = vmatprep.subr.mxu0 0.0
    %107 = vmatpush1.msra.mxu0 0.0
    %108 = vmatprep.subr.mxu0 0.0
    %109 = vmatpush1.msra.mxu0 0.0
    %110 = vmatprep.subr.mxu0 0.0
    %111 = vmatpush1.msra.mxu0 0.0
    %112 = vmatprep.subr.mxu0 0.0
    %113 = vmatpush1.msra.mxu0 0.0
    %114 = vmatprep.subr.mxu0 0.0
    %115 = vmatpush1.msra.mxu0 0.0
    %116 = vmatprep.mubr.f32.mxu0 0.0
    %117 = vmatmul.mubr.f32.gmra.mrb[0].mxu0 %v46
    %v118 = vpop.f32.mrb[0].mxu0
    %v119 = vadd.f32 0.0, %v118
    %v120 = vpop.f32.mrb[0].mxu0
    %121 = vdwg.mxu0
    %vm122 = vcmask 105472
    %123 = vst.msk [vmem:[#allocation2] sm:$0xff] %vm122, %v119
    // Predicated region
    $region14: #{tpu_custom_call.1} parent=1 // pred_check
      _
    $region15: #{tpu_custom_call.1} parent=1 // pred_check_branch
      %125 = sbr.rel (0) target = $region17
    $region16: #{tpu_custom_call.1} parent=1 // pred_region
      %s127 = ssub.s32 128, 128
      %128 = vsyncadd [#allocation3], %s127
      %s130 = sshll.u32 [#allocation2], 4
      %s131 = int_to_ptr.vmem [resolvable:$true] %s130
      %133 = dma.vmem_to_hbm [thread:$0]  %s131, 128, %s3, [#allocation3]
    $region17: #{tpu_custom_call.1} parent=1 // pred_fallthru
      _
    // Predicated region
    $region18: #{tpu_custom_call.1} parent=1 // pred_check
      _
    $region19: #{tpu_custom_call.1} parent=1 // pred_check_branch
      %135 = sbr.rel (0) target = $region21
    $region20: #{tpu_custom_call.1} parent=1 // pred_region
      %136 = dma.done [#allocation3], 128
    $region21: #{tpu_custom_call.1} parent=1 // pred_fallthru
      _
    %137 = vsyncpa [#allocation3], 1

</llo_original>
